<compile_context>
chip_gen: v6e
topology: v6e:2x2x1
jax: 0.10.0
libtpu: 0.0.40
codegen_flags: <defaults>
</compile_context>

<pallas_src>
import functools

import jax
import jax.numpy as jnp
from jax.experimental import pallas as pl
from jax.experimental.pallas import tpu as pltpu


def _simple_head_kernel(x_ref, w_ref, b_ref, o_ref, *, inv_hw):
    # x_ref: (Bt, C, HW)   w_ref: (C, NC)   b_ref: (1, NC)   o_ref: (Bt, NC)
    # Global average pool: reduce the spatial (lane) axis in f32.
    pooled = jnp.sum(x_ref[...].astype(jnp.float32), axis=-1) * inv_hw      # (Bt, C)
    # Classifier: (Bt, C) @ (C, NC) on the MXU, f32 accumulation, + bias.
    out = jnp.dot(pooled, w_ref[...].astype(jnp.float32),
                  preferred_element_type=jnp.float32)
    out = out + b_ref[...].astype(jnp.float32)
    o_ref[...] = out.astype(o_ref.dtype)


def simple_head_forward(x, weight, bias, *, block_b=None,
                        vmem_budget_bytes=16 * 1024 * 1024):
    """SimpleHead.forward:  x (B, C, H, W), weight (NC, C), bias (NC,) -> (B, NC)."""
    B, C, H, W = x.shape
    NC, Cw = weight.shape
    assert Cw == C and bias.shape == (NC,)
    HW = H * W

    # Lane-dense layouts for the kernel.
    x3 = x.reshape(B, C, HW)          # spatial pixels on lanes for the reduce
    w_t = weight.T                    # (C, NC): contraction dim leading, NC on lanes
    b2 = bias.reshape(1, NC)

    # ---- choose batch tile (multiple of 8, sized to a VMEM budget) ----
    itemsize = jnp.dtype(x.dtype).itemsize
    if block_b is None:
        # double-buffered input tile + output tile per batch row (f32 upper bound)
        bytes_per_b = (C * HW * itemsize + NC * 4) * 2
        block_b = vmem_budget_bytes // max(bytes_per_b, 1)
        block_b = max(8, min(512, (block_b // 8) * 8))
    b_pad8 = ((B + 7) // 8) * 8
    block_b = min(block_b, b_pad8)

    if block_b >= B:
        # Single grid step: full-extent batch block, no padding needed.
        block_b = B
        b_padded = B
    else:
        # block_b is a multiple of 8 here -> aligned partial blocks; pad batch.
        b_padded = pl.cdiv(B, block_b) * block_b
    if b_padded != B:
        x3 = jnp.pad(x3, ((0, b_padded - B), (0, 0), (0, 0)))

    grid = (b_padded // block_b,)

    out = pl.pallas_call(
        functools.partial(_simple_head_kernel, inv_hw=1.0 / HW),
        out_shape=jax.ShapeDtypeStruct((b_padded, NC), x.dtype),
        grid=grid,
        in_specs=[
            pl.BlockSpec((block_b, C, HW), lambda b: (b, 0, 0)),   # activations
            pl.BlockSpec((C, NC), lambda b: (0, 0)),               # classifier weight
            pl.BlockSpec((1, NC), lambda b: (0, 0)),               # classifier bias
        ],
        out_specs=pl.BlockSpec((block_b, NC), lambda b: (b, 0)),
        compiler_params=pltpu.CompilerParams(
            dimension_semantics=("parallel",)),
    )(x3, w_t, b2)

    return out[:B]


def simple_head_ref(x, weight, bias):
    """Pure-JAX reference mirroring the PyTorch module."""
    pooled = x.astype(jnp.float32).mean(axis=(2, 3))                 # (B, C)
    return (pooled @ weight.T.astype(jnp.float32)
            + bias.astype(jnp.float32)).astype(x.dtype)


if __name__ == "__main__":
    # Small, TPU-friendly shapes consistent with the module:
    #   input (B, C, H, W); classifier Linear(C -> NC).
    B, C, H, W = 4, 256, 8, 8
    NC = 128

    rng = jax.random.PRNGKey(0)
    kx, kw = jax.random.split(rng, 2)

    x = jax.random.normal(kx, (B, C, H, W), dtype=jnp.float32)
    # weights_init: normal(std=0.001) for the Linear weight, bias = 0.
    weight = 0.001 * jax.random.normal(kw, (NC, C), dtype=jnp.float32)
    bias = jnp.zeros((NC,), dtype=jnp.float32)

    out = simple_head_forward(x, weight, bias)
    jax.block_until_ready(out)

    # Correctness check against the pure-JAX reference.
    ref = simple_head_ref(x, weight, bias)
    assert out.shape == (B, NC)
    assert jnp.allclose(out, ref, atol=1e-5, rtol=1e-5)

    print("KERNEL_OK")
</pallas_src>

<mosaic_0001>
module attributes {stable_mosaic.version = 11 : i64} {
  func.func @_simple_head_kernel(%arg0: i32, %arg1: memref<4x256x64xf32, #tpu.memory_space<vmem>>, %arg2: memref<256x128xf32, #tpu.memory_space<vmem>>, %arg3: memref<1x128xf32, #tpu.memory_space<vmem>>, %arg4: memref<4x128xf32, #tpu.memory_space<vmem>>) attributes {dimension_semantics = [#tpu.dimension_semantics<parallel>], iteration_bounds = array<i64: 1>, scalar_prefetch = 0 : i64, scratch_operands = 0 : i64, tpu.core_type = #tpu.core_type<tc>, window_params = [{transform_indices = @transform_0, window_bounds = array<i64: 4, 256, 64>}, {pipeline_mode = #tpu.pipeline_mode<synchronous>, transform_indices = @transform_1, window_bounds = array<i64: 256, 128>}, {pipeline_mode = #tpu.pipeline_mode<synchronous>, transform_indices = @transform_2, window_bounds = array<i64: 1, 128>}, {transform_indices = @transform_3, window_bounds = array<i64: 4, 128>}]} {
    %c0 = arith.constant 0 : index
    %c0_0 = arith.constant 0 : index
    %c0_1 = arith.constant 0 : index
    %0 = vector.load %arg1[%c0, %c0_0, %c0_1] : memref<4x256x64xf32, #tpu.memory_space<vmem>>, vector<4x256x64xf32>
    %cst = arith.constant dense<0.000000e+00> : vector<4x256xf32>
    %1 = vector.multi_reduction <add>, %0, %cst [2] : vector<4x256x64xf32> to vector<4x256xf32>
    %cst_2 = arith.constant 1.562500e-02 : f32
    %2 = vector.broadcast %cst_2 : f32 to vector<4x256xf32>
    %3 = arith.mulf %1, %2 : vector<4x256xf32>
    %c0_3 = arith.constant 0 : index
    %c0_4 = arith.constant 0 : index
    %4 = vector.load %arg2[%c0_3, %c0_4] : memref<256x128xf32, #tpu.memory_space<vmem>>, vector<256x128xf32>
    %cst_5 = arith.constant dense<0.000000e+00> : vector<4x128xf32>
    %5 = tpu.matmul %3, %4, %cst_5 {dimension_numbers = #tpu.dot_dimension_numbers<[1], [0], [0], [1], [0, 0, 1, 1], [], []>} : vector<4x256xf32>, vector<256x128xf32>, vector<4x128xf32> -> vector<4x128xf32>
    %c0_6 = arith.constant 0 : index
    %c0_7 = arith.constant 0 : index
    %6 = vector.load %arg3[%c0_6, %c0_7] : memref<1x128xf32, #tpu.memory_space<vmem>>, vector<1x128xf32>
    %7 = vector.broadcast %6 : vector<1x128xf32> to vector<4x128xf32>
    %8 = arith.addf %5, %7 : vector<4x128xf32>
    %c0_8 = arith.constant 0 : index
    %c0_9 = arith.constant 0 : index
    %9 = vector.load %arg4[%c0_8, %c0_9] : memref<4x128xf32, #tpu.memory_space<vmem>>, vector<4x128xf32>
    tpu.vector_store %arg4[%c0_8, %c0_9], %8 {strides = array<i32>} : memref<4x128xf32, #tpu.memory_space<vmem>>, vector<4x128xf32>,
    return
  }
  func.func @transform_0(%arg0: i32) -> (i32, i32, i32) {
    %c0_i32 = arith.constant 0 : i32
    %c0_i32_0 = arith.constant 0 : i32
    %c0_i32_1 = arith.constant 0 : i32
    return %arg0, %c0_i32, %c0_i32_0 : i32, i32, i32
  }
  func.func @transform_1(%arg0: i32) -> (i32, i32) {
    %c0_i32 = arith.constant 0 : i32
    %c0_i32_0 = arith.constant 0 : i32
    %c0_i32_1 = arith.constant 0 : i32
    return %c0_i32, %c0_i32_0 : i32, i32
  }
  func.func @transform_2(%arg0: i32) -> (i32, i32) {
    %c0_i32 = arith.constant 0 : i32
    %c0_i32_0 = arith.constant 0 : i32
    %c0_i32_1 = arith.constant 0 : i32
    return %c0_i32, %c0_i32_0 : i32, i32
  }
  func.func @transform_3(%arg0: i32) -> (i32, i32) {
    %c0_i32 = arith.constant 0 : i32
    %c0_i32_0 = arith.constant 0 : i32
    return %arg0, %c0_i32 : i32, i32
  }
}

</mosaic_0001>

<llo_original>
// kernel: tpu_custom_call.1
$region0: #{tpu_custom_call.1}
  #allocation0 [shape = 'u32[]', space=smem, size = 0x4, offset = 0x4, fixed_abs, tag = 'smem constant byte address 0x4 - core index']
  #allocation1 [shape = 'u32[144,128]{1,0:T(1,128)}', space=vmem, size = 0x12000, scoped, tag = 'internal scratch']
  %s0 = inlined_call_operand.vmem [shape: f32[4,256,64], index: 0, kind: input, shape index: {}]
  %s1 = inlined_call_operand.vmem [shape: f32[256,128], index: 1, kind: input, shape index: {}]
  %s2 = inlined_call_operand.vmem [shape: f32[1,128], index: 2, kind: input, shape index: {}]
  %s3 = inlined_call_operand.hbm [shape: f32[4,128], index: 3, kind: output, shape index: {}]
  %s4 = sld [smem:[#allocation0]]
  $region22: #{tpu_custom_call.1} parent=0
    _
  %s6 = ssub.s32 1, %s4
  %s7 = scalar_select 0, %s6, %s4
  $region1: #{tpu_custom_call.1} parent=0
    #allocation2 [shape = 'u8[2048]{0}', space=vmem, size = 0x800, scoped, tag = 'output window, operand 0, single buffered']
    #allocation3 [shape = 's32[1]{0}', space=sflag, size = 0x4, scoped, tag = 'scoped memory for tpu_custom_call.1']
    %8 = vsyncpa [#allocation3], 0
    // Predicated region
    $region2: #{tpu_custom_call.1} parent=1 // pred_check
      _
    $region3: #{tpu_custom_call.1} parent=1 // pred_check_branch
      %10 = sbr.rel (0) target = $region5
    $region4: #{tpu_custom_call.1} parent=1 // pred_region
      _
    $region5: #{tpu_custom_call.1} parent=1 // pred_fallthru
      _
    // Predicated region
    $region6: #{tpu_custom_call.1} parent=1 // pred_check
      _
    $region7: #{tpu_custom_call.1} parent=1 // pred_check_branch
      %12 = sbr.rel (0) target = $region9
    $region8: #{tpu_custom_call.1} parent=1 // pred_region
      _
    $region9: #{tpu_custom_call.1} parent=1 // pred_fallthru
      _
    // Predicated region
    $region10: #{tpu_custom_call.1} parent=1 // pred_check
      _
    $region11: #{tpu_custom_call.1} parent=1 // pred_check_branch
      %14 = sbr.rel (0) target = $region13
    $region12: #{tpu_custom_call.1} parent=1 // pred_region
      _
    $region13: #{tpu_custom_call.1} parent=1 // pred_fallthru
      _
    %v15 = vld [vmem:[%s0] sm:$0xff]
    %v16 = vld [vmem:[%s0 + $0x8] sm:$0xff]
    %v17 = vld [vmem:[%s0 + $0x10] sm:$0xff]
    %v18 = vld [vmem:[%s0 + $0x18] sm:$0xff]
    %v19 = vld [vmem:[%s0 + $0x20] sm:$0xff]
    %v20 = vld [vmem:[%s0 + $0x28] sm:$0xff]
    %v21 = vld [vmem:[%s0 + $0x30] sm:$0xff]
    %v22 = vld [vmem:[%s0 + $0x38] sm:$0xff]
    %v23 = vld [vmem:[%s0 + $0x40] sm:$0xff]
    %v24 = vld [vmem:[%s0 + $0x48] sm:$0xff]
    %v25 = vld [vmem:[%s0 + $0x50] sm:$0xff]
    %v26 = vld [vmem:[%s0 + $0x58] sm:$0xff]
    %v27 = vld [vmem:[%s0 + $0x60] sm:$0xff]
    %v28 = vld [vmem:[%s0 + $0x68] sm:$0xff]
    %v29 = vld [vmem:[%s0 + $0x70] sm:$0xff]
    %v30 = vld [vmem:[%s0 + $0x78] sm:$0xff]
    %v31 = vld [vmem:[%s0 + $0x80] sm:$0xff]
    %v32 = vld [vmem:[%s0 + $0x88] sm:$0xff]
    %v33 = vld [vmem:[%s0 + $0x90] sm:$0xff]
    %v34 = vld [vmem:[%s0 + $0x98] sm:$0xff]
    %v35 = vld [vmem:[%s0 + $0xa0] sm:$0xff]
    %v36 = vld [vmem:[%s0 + $0xa8] sm:$0xff]
    %v37 = vld [vmem:[%s0 + $0xb0] sm:$0xff]
    %v38 = vld [vmem:[%s0 + $0xb8] sm:$0xff]
    %v39 = vld [vmem:[%s0 + $0xc0] sm:$0xff]
    %v40 = vld [vmem:[%s0 + $0xc8] sm:$0xff]
    %v41 = vld [vmem:[%s0 + $0xd0] sm:$0xff]
    %v42 = vld [vmem:[%s0 + $0xd8] sm:$0xff]
    %v43 = vld [vmem:[%s0 + $0xe0] sm:$0xff]
    %v44 = vld [vmem:[%s0 + $0xe8] sm:$0xff]
    %v45 = vld [vmem:[%s0 + $0xf0] sm:$0xff]
    %v46 = vld [vmem:[%s0 + $0xf8] sm:$0xff]
    %v47 = vld [vmem:[%s0 + $0x100] sm:$0xff]
    %v48 = vld [vmem:[%s0 + $0x108] sm:$0xff]
    %v49 = vld [vmem:[%s0 + $0x110] sm:$0xff]
    %v50 = vld [vmem:[%s0 + $0x118] sm:$0xff]
    %v51 = vld [vmem:[%s0 + $0x120] sm:$0xff]
    %v52 = vld [vmem:[%s0 + $0x128] sm:$0xff]
    %v53 = vld [vmem:[%s0 + $0x130] sm:$0xff]
    %v54 = vld [vmem:[%s0 + $0x138] sm:$0xff]
    %v55 = vld [vmem:[%s0 + $0x140] sm:$0xff]
    %v56 = vld [vmem:[%s0 + $0x148] sm:$0xff]
    %v57 = vld [vmem:[%s0 + $0x150] sm:$0xff]
    %v58 = vld [vmem:[%s0 + $0x158] sm:$0xff]
    %v59 = vld [vmem:[%s0 + $0x160] sm:$0xff]
    %v60 = vld [vmem:[%s0 + $0x168] sm:$0xff]
    %v61 = vld [vmem:[%s0 + $0x170] sm:$0xff]
    %v62 = vld [vmem:[%s0 + $0x178] sm:$0xff]
    %v63 = vld [vmem:[%s0 + $0x180] sm:$0xff]
    %v64 = vld [vmem:[%s0 + $0x188] sm:$0xff]
    %v65 = vld [vmem:[%s0 + $0x190] sm:$0xff]
    %v66 = vld [vmem:[%s0 + $0x198] sm:$0xff]
    %v67 = vld [vmem:[%s0 + $0x1a0] sm:$0xff]
    %v68 = vld [vmem:[%s0 + $0x1a8] sm:$0xff]
    %v69 = vld [vmem:[%s0 + $0x1b0] sm:$0xff]
    %v70 = vld [vmem:[%s0 + $0x1b8] sm:$0xff]
    %v71 = vld [vmem:[%s0 + $0x1c0] sm:$0xff]
    %v72 = vld [vmem:[%s0 + $0x1c8] sm:$0xff]
    %v73 = vld [vmem:[%s0 + $0x1d0] sm:$0xff]
    %v74 = vld [vmem:[%s0 + $0x1d8] sm:$0xff]
    %v75 = vld [vmem:[%s0 + $0x1e0] sm:$0xff]
    %v76 = vld [vmem:[%s0 + $0x1e8] sm:$0xff]
    %v77 = vld [vmem:[%s0 + $0x1f0] sm:$0xff]
    %v78 = vld [vmem:[%s0 + $0x1f8] sm:$0xff]
    %v79 = vld [vmem:[%s0 + $0x200] sm:$0xff]
    %v80 = vld [vmem:[%s0 + $0x208] sm:$0xff]
    %v81 = vld [vmem:[%s0 + $0x210] sm:$0xff]
    %v82 = vld [vmem:[%s0 + $0x218] sm:$0xff]
    %v83 = vld [vmem:[%s0 + $0x220] sm:$0xff]
    %v84 = vld [vmem:[%s0 + $0x228] sm:$0xff]
    %v85 = vld [vmem:[%s0 + $0x230] sm:$0xff]
    %v86 = vld [vmem:[%s0 + $0x238] sm:$0xff]
    %v87 = vld [vmem:[%s0 + $0x240] sm:$0xff]
    %v88 = vld [vmem:[%s0 + $0x248] sm:$0xff]
    %v89 = vld [vmem:[%s0 + $0x250] sm:$0xff]
    %v90 = vld [vmem:[%s0 + $0x258] sm:$0xff]
    %v91 = vld [vmem:[%s0 + $0x260] sm:$0xff]
    %v92 = vld [vmem:[%s0 + $0x268] sm:$0xff]
    %v93 = vld [vmem:[%s0 + $0x270] sm:$0xff]
    %v94 = vld [vmem:[%s0 + $0x278] sm:$0xff]
    %v95 = vld [vmem:[%s0 + $0x280] sm:$0xff]
    %v96 = vld [vmem:[%s0 + $0x288] sm:$0xff]
    %v97 = vld [vmem:[%s0 + $0x290] sm:$0xff]
    %v98 = vld [vmem:[%s0 + $0x298] sm:$0xff]
    %v99 = vld [vmem:[%s0 + $0x2a0] sm:$0xff]
    %v100 = vld [vmem:[%s0 + $0x2a8] sm:$0xff]
    %v101 = vld [vmem:[%s0 + $0x2b0] sm:$0xff]
    %v102 = vld [vmem:[%s0 + $0x2b8] sm:$0xff]
    %v103 = vld [vmem:[%s0 + $0x2c0] sm:$0xff]
    %v104 = vld [vmem:[%s0 + $0x2c8] sm:$0xff]
    %v105 = vld [vmem:[%s0 + $0x2d0] sm:$0xff]
    %v106 = vld [vmem:[%s0 + $0x2d8] sm:$0xff]
    %v107 = vld [vmem:[%s0 + $0x2e0] sm:$0xff]
    %v108 = vld [vmem:[%s0 + $0x2e8] sm:$0xff]
    %v109 = vld [vmem:[%s0 + $0x2f0] sm:$0xff]
    %v110 = vld [vmem:[%s0 + $0x2f8] sm:$0xff]
    %v111 = vld [vmem:[%s0 + $0x300] sm:$0xff]
    %v112 = vld [vmem:[%s0 + $0x308] sm:$0xff]
    %v113 = vld [vmem:[%s0 + $0x310] sm:$0xff]
    %v114 = vld [vmem:[%s0 + $0x318] sm:$0xff]
    %v115 = vld [vmem:[%s0 + $0x320] sm:$0xff]
    %v116 = vld [vmem:[%s0 + $0x328] sm:$0xff]
    %v117 = vld [vmem:[%s0 + $0x330] sm:$0xff]
    %v118 = vld [vmem:[%s0 + $0x338] sm:$0xff]
    %v119 = vld [vmem:[%s0 + $0x340] sm:$0xff]
    %v120 = vld [vmem:[%s0 + $0x348] sm:$0xff]
    %v121 = vld [vmem:[%s0 + $0x350] sm:$0xff]
    %v122 = vld [vmem:[%s0 + $0x358] sm:$0xff]
    %v123 = vld [vmem:[%s0 + $0x360] sm:$0xff]
    %v124 = vld [vmem:[%s0 + $0x368] sm:$0xff]
    %v125 = vld [vmem:[%s0 + $0x370] sm:$0xff]
    %v126 = vld [vmem:[%s0 + $0x378] sm:$0xff]
    %v127 = vld [vmem:[%s0 + $0x380] sm:$0xff]
    %v128 = vld [vmem:[%s0 + $0x388] sm:$0xff]
    %v129 = vld [vmem:[%s0 + $0x390] sm:$0xff]
    %v130 = vld [vmem:[%s0 + $0x398] sm:$0xff]
    %v131 = vld [vmem:[%s0 + $0x3a0] sm:$0xff]
    %v132 = vld [vmem:[%s0 + $0x3a8] sm:$0xff]
    %v133 = vld [vmem:[%s0 + $0x3b0] sm:$0xff]
    %v134 = vld [vmem:[%s0 + $0x3b8] sm:$0xff]
    %v135 = vld [vmem:[%s0 + $0x3c0] sm:$0xff]
    %v136 = vld [vmem:[%s0 + $0x3c8] sm:$0xff]
    %v137 = vld [vmem:[%s0 + $0x3d0] sm:$0xff]
    %v138 = vld [vmem:[%s0 + $0x3d8] sm:$0xff]
    %v139 = vld [vmem:[%s0 + $0x3e0] sm:$0xff]
    %v140 = vld [vmem:[%s0 + $0x3e8] sm:$0xff]
    %v141 = vld [vmem:[%s0 + $0x3f0] sm:$0xff]
    %v142 = vld [vmem:[%s0 + $0x3f8] sm:$0xff]
    %vm143 = vcmask 523264
    %v144 = vsel %vm143, %v15, 0.0
    %145 = vadd.xlane.f32.xlu0 %v144
    %v146 = vpop.xlane.xlu0 %145
    %v147 = vsel %vm143, %v16, 0.0
    %148 = vadd.xlane.f32.xlu0 %v147
    %v149 = vpop.xlane.xlu0 %148
    %v150 = vsel %vm143, %v17, 0.0
    %151 = vadd.xlane.f32.xlu0 %v150
    %v152 = vpop.xlane.xlu0 %151
    %v153 = vsel %vm143, %v18, 0.0
    %154 = vadd.xlane.f32.xlu0 %v153
    %v155 = vpop.xlane.xlu0 %154
    %v156 = vsel %vm143, %v19, 0.0
    %157 = vadd.xlane.f32.xlu0 %v156
    %v158 = vpop.xlane.xlu0 %157
    %v159 = vsel %vm143, %v20, 0.0
    %160 = vadd.xlane.f32.xlu0 %v159
    %v161 = vpop.xlane.xlu0 %160
    %v162 = vsel %vm143, %v21, 0.0
    %163 = vadd.xlane.f32.xlu0 %v162
    %v164 = vpop.xlane.xlu0 %163
    %v165 = vsel %vm143, %v22, 0.0
    %166 = vadd.xlane.f32.xlu0 %v165
    %v167 = vpop.xlane.xlu0 %166
    %v168 = vsel %vm143, %v23, 0.0
    %169 = vadd.xlane.f32.xlu0 %v168
    %v170 = vpop.xlane.xlu0 %169
    %v171 = vsel %vm143, %v24, 0.0
    %172 = vadd.xlane.f32.xlu0 %v171
    %v173 = vpop.xlane.xlu0 %172
    %v174 = vsel %vm143, %v25, 0.0
    %175 = vadd.xlane.f32.xlu0 %v174
    %v176 = vpop.xlane.xlu0 %175
    %v177 = vsel %vm143, %v26, 0.0
    %178 = vadd.xlane.f32.xlu0 %v177
    %v179 = vpop.xlane.xlu0 %178
    %v180 = vsel %vm143, %v27, 0.0
    %181 = vadd.xlane.f32.xlu0 %v180
    %v182 = vpop.xlane.xlu0 %181
    %v183 = vsel %vm143, %v28, 0.0
    %184 = vadd.xlane.f32.xlu0 %v183
    %v185 = vpop.xlane.xlu0 %184
    %v186 = vsel %vm143, %v29, 0.0
    %187 = vadd.xlane.f32.xlu0 %v186
    %v188 = vpop.xlane.xlu0 %187
    %v189 = vsel %vm143, %v30, 0.0
    %190 = vadd.xlane.f32.xlu0 %v189
    %v191 = vpop.xlane.xlu0 %190
    %v192 = vsel %vm143, %v31, 0.0
    %193 = vadd.xlane.f32.xlu0 %v192
    %v194 = vpop.xlane.xlu0 %193
    %v195 = vsel %vm143, %v32, 0.0
    %196 = vadd.xlane.f32.xlu0 %v195
    %v197 = vpop.xlane.xlu0 %196
    %v198 = vsel %vm143, %v33, 0.0
    %199 = vadd.xlane.f32.xlu0 %v198
    %v200 = vpop.xlane.xlu0 %199
    %v201 = vsel %vm143, %v34, 0.0
    %202 = vadd.xlane.f32.xlu0 %v201
    %v203 = vpop.xlane.xlu0 %202
    %v204 = vsel %vm143, %v35, 0.0
    %205 = vadd.xlane.f32.xlu0 %v204
    %v206 = vpop.xlane.xlu0 %205
    %v207 = vsel %vm143, %v36, 0.0
    %208 = vadd.xlane.f32.xlu0 %v207
    %v209 = vpop.xlane.xlu0 %208
    %v210 = vsel %vm143, %v37, 0.0
    %211 = vadd.xlane.f32.xlu0 %v210
    %v212 = vpop.xlane.xlu0 %211
    %v213 = vsel %vm143, %v38, 0.0
    %214 = vadd.xlane.f32.xlu0 %v213
    %v215 = vpop.xlane.xlu0 %214
    %v216 = vsel %vm143, %v39, 0.0
    %217 = vadd.xlane.f32.xlu0 %v216
    %v218 = vpop.xlane.xlu0 %217
    %v219 = vsel %vm143, %v40, 0.0
    %220 = vadd.xlane.f32.xlu0 %v219
    %v221 = vpop.xlane.xlu0 %220
    %v222 = vsel %vm143, %v41, 0.0
    %223 = vadd.xlane.f32.xlu0 %v222
    %v224 = vpop.xlane.xlu0 %223
    %v225 = vsel %vm143, %v42, 0.0
    %226 = vadd.xlane.f32.xlu0 %v225
    %v227 = vpop.xlane.xlu0 %226
    %v228 = vsel %vm143, %v43, 0.0
    %229 = vadd.xlane.f32.xlu0 %v228
    %v230 = vpop.xlane.xlu0 %229
    %v231 = vsel %vm143, %v44, 0.0
    %232 = vadd.xlane.f32.xlu0 %v231
    %v233 = vpop.xlane.xlu0 %232
    %v234 = vsel %vm143, %v45, 0.0
    %235 = vadd.xlane.f32.xlu0 %v234
    %v236 = vpop.xlane.xlu0 %235
    %v237 = vsel %vm143, %v46, 0.0
    %238 = vadd.xlane.f32.xlu0 %v237
    %v239 = vpop.xlane.xlu0 %238
    %v240 = vsel %vm143, %v47, 0.0
    %241 = vadd.xlane.f32.xlu0 %v240
    %v242 = vpop.xlane.xlu0 %241
    %v243 = vsel %vm143, %v48, 0.0
    %244 = vadd.xlane.f32.xlu0 %v243
    %v245 = vpop.xlane.xlu0 %244
    %v246 = vsel %vm143, %v49, 0.0
    %247 = vadd.xlane.f32.xlu0 %v246
    %v248 = vpop.xlane.xlu0 %247
    %v249 = vsel %vm143, %v50, 0.0
    %250 = vadd.xlane.f32.xlu0 %v249
    %v251 = vpop.xlane.xlu0 %250
    %v252 = vsel %vm143, %v51, 0.0
    %253 = vadd.xlane.f32.xlu0 %v252
    %v254 = vpop.xlane.xlu0 %253
    %v255 = vsel %vm143, %v52, 0.0
    %256 = vadd.xlane.f32.xlu0 %v255
    %v257 = vpop.xlane.xlu0 %256
    %v258 = vsel %vm143, %v53, 0.0
    %259 = vadd.xlane.f32.xlu0 %v258
    %v260 = vpop.xlane.xlu0 %259
    %v261 = vsel %vm143, %v54, 0.0
    %262 = vadd.xlane.f32.xlu0 %v261
    %v263 = vpop.xlane.xlu0 %262
    %v264 = vsel %vm143, %v55, 0.0
    %265 = vadd.xlane.f32.xlu0 %v264
    %v266 = vpop.xlane.xlu0 %265
    %v267 = vsel %vm143, %v56, 0.0
    %268 = vadd.xlane.f32.xlu0 %v267
    %v269 = vpop.xlane.xlu0 %268
    %v270 = vsel %vm143, %v57, 0.0
    %271 = vadd.xlane.f32.xlu0 %v270
    %v272 = vpop.xlane.xlu0 %271
    %v273 = vsel %vm143, %v58, 0.0
    %274 = vadd.xlane.f32.xlu0 %v273
    %v275 = vpop.xlane.xlu0 %274
    %v276 = vsel %vm143, %v59, 0.0
    %277 = vadd.xlane.f32.xlu0 %v276
    %v278 = vpop.xlane.xlu0 %277
    %v279 = vsel %vm143, %v60, 0.0
    %280 = vadd.xlane.f32.xlu0 %v279
    %v281 = vpop.xlane.xlu0 %280
    %v282 = vsel %vm143, %v61, 0.0
    %283 = vadd.xlane.f32.xlu0 %v282
    %v284 = vpop.xlane.xlu0 %283
    %v285 = vsel %vm143, %v62, 0.0
    %286 = vadd.xlane.f32.xlu0 %v285
    %v287 = vpop.xlane.xlu0 %286
    %v288 = vsel %vm143, %v63, 0.0
    %289 = vadd.xlane.f32.xlu0 %v288
    %v290 = vpop.xlane.xlu0 %289
    %v291 = vsel %vm143, %v64, 0.0
    %292 = vadd.xlane.f32.xlu0 %v291
    %v293 = vpop.xlane.xlu0 %292
    %v294 = vsel %vm143, %v65, 0.0
    %295 = vadd.xlane.f32.xlu0 %v294
    %v296 = vpop.xlane.xlu0 %295
    %v297 = vsel %vm143, %v66, 0.0
    %298 = vadd.xlane.f32.xlu0 %v297
    %v299 = vpop.xlane.xlu0 %298
    %v300 = vsel %vm143, %v67, 0.0
    %301 = vadd.xlane.f32.xlu0 %v300
    %v302 = vpop.xlane.xlu0 %301
    %v303 = vsel %vm143, %v68, 0.0
    %304 = vadd.xlane.f32.xlu0 %v303
    %v305 = vpop.xlane.xlu0 %304
    %v306 = vsel %vm143, %v69, 0.0
    %307 = vadd.xlane.f32.xlu0 %v306
    %v308 = vpop.xlane.xlu0 %307
    %v309 = vsel %vm143, %v70, 0.0
    %310 = vadd.xlane.f32.xlu0 %v309
    %v311 = vpop.xlane.xlu0 %310
    %v312 = vsel %vm143, %v71, 0.0
    %313 = vadd.xlane.f32.xlu0 %v312
    %v314 = vpop.xlane.xlu0 %313
    %v315 = vsel %vm143, %v72, 0.0
    %316 = vadd.xlane.f32.xlu0 %v315
    %v317 = vpop.xlane.xlu0 %316
    %v318 = vsel %vm143, %v73, 0.0
    %319 = vadd.xlane.f32.xlu0 %v318
    %v320 = vpop.xlane.xlu0 %319
    %v321 = vsel %vm143, %v74, 0.0
    %322 = vadd.xlane.f32.xlu0 %v321
    %v323 = vpop.xlane.xlu0 %322
    %v324 = vsel %vm143, %v75, 0.0
    %325 = vadd.xlane.f32.xlu0 %v324
    %v326 = vpop.xlane.xlu0 %325
    %v327 = vsel %vm143, %v76, 0.0
    %328 = vadd.xlane.f32.xlu0 %v327
    %v329 = vpop.xlane.xlu0 %328
    %v330 = vsel %vm143, %v77, 0.0
    %331 = vadd.xlane.f32.xlu0 %v330
    %v332 = vpop.xlane.xlu0 %331
    %v333 = vsel %vm143, %v78, 0.0
    %334 = vadd.xlane.f32.xlu0 %v333
    %v335 = vpop.xlane.xlu0 %334
    %v336 = vsel %vm143, %v79, 0.0
    %337 = vadd.xlane.f32.xlu0 %v336
    %v338 = vpop.xlane.xlu0 %337
    %v339 = vsel %vm143, %v80, 0.0
    %340 = vadd.xlane.f32.xlu0 %v339
    %v341 = vpop.xlane.xlu0 %340
    %v342 = vsel %vm143, %v81, 0.0
    %343 = vadd.xlane.f32.xlu0 %v342
    %v344 = vpop.xlane.xlu0 %343
    %v345 = vsel %vm143, %v82, 0.0
    %346 = vadd.xlane.f32.xlu0 %v345
    %v347 = vpop.xlane.xlu0 %346
    %v348 = vsel %vm143, %v83, 0.0
    %349 = vadd.xlane.f32.xlu0 %v348
    %v350 = vpop.xlane.xlu0 %349
    %v351 = vsel %vm143, %v84, 0.0
    %352 = vadd.xlane.f32.xlu0 %v351
    %v353 = vpop.xlane.xlu0 %352
    %v354 = vsel %vm143, %v85, 0.0
    %355 = vadd.xlane.f32.xlu0 %v354
    %v356 = vpop.xlane.xlu0 %355
    %v357 = vsel %vm143, %v86, 0.0
    %358 = vadd.xlane.f32.xlu0 %v357
    %v359 = vpop.xlane.xlu0 %358
    %v360 = vsel %vm143, %v87, 0.0
    %361 = vadd.xlane.f32.xlu0 %v360
    %v362 = vpop.xlane.xlu0 %361
    %v363 = vsel %vm143, %v88, 0.0
    %364 = vadd.xlane.f32.xlu0 %v363
    %v365 = vpop.xlane.xlu0 %364
    %v366 = vsel %vm143, %v89, 0.0
    %367 = vadd.xlane.f32.xlu0 %v366
    %v368 = vpop.xlane.xlu0 %367
    %v369 = vsel %vm143, %v90, 0.0
    %370 = vadd.xlane.f32.xlu0 %v369
    %v371 = vpop.xlane.xlu0 %370
    %v372 = vsel %vm143, %v91, 0.0
    %373 = vadd.xlane.f32.xlu0 %v372
    %v374 = vpop.xlane.xlu0 %373
    %v375 = vsel %vm143, %v92, 0.0
    %376 = vadd.xlane.f32.xlu0 %v375
    %v377 = vpop.xlane.xlu0 %376
    %v378 = vsel %vm143, %v93, 0.0
    %379 = vadd.xlane.f32.xlu0 %v378
    %v380 = vpop.xlane.xlu0 %379
    %v381 = vsel %vm143, %v94, 0.0
    %382 = vadd.xlane.f32.xlu0 %v381
    %v383 = vpop.xlane.xlu0 %382
    %v384 = vsel %vm143, %v95, 0.0
    %385 = vadd.xlane.f32.xlu0 %v384
    %v386 = vpop.xlane.xlu0 %385
    %v387 = vsel %vm143, %v96, 0.0
    %388 = vadd.xlane.f32.xlu0 %v387
    %v389 = vpop.xlane.xlu0 %388
    %v390 = vsel %vm143, %v97, 0.0
    %391 = vadd.xlane.f32.xlu0 %v390
    %v392 = vpop.xlane.xlu0 %391
    %v393 = vsel %vm143, %v98, 0.0
    %394 = vadd.xlane.f32.xlu0 %v393
    %v395 = vpop.xlane.xlu0 %394
    %v396 = vsel %vm143, %v99, 0.0
    %397 = vadd.xlane.f32.xlu0 %v396
    %v398 = vpop.xlane.xlu0 %397
    %v399 = vsel %vm143, %v100, 0.0
    %400 = vadd.xlane.f32.xlu0 %v399
    %v401 = vpop.xlane.xlu0 %400
    %v402 = vsel %vm143, %v101, 0.0
    %403 = vadd.xlane.f32.xlu0 %v402
    %v404 = vpop.xlane.xlu0 %403
    %v405 = vsel %vm143, %v102, 0.0
    %406 = vadd.xlane.f32.xlu0 %v405
    %v407 = vpop.xlane.xlu0 %406
    %v408 = vsel %vm143, %v103, 0.0
    %409 = vadd.xlane.f32.xlu0 %v408
    %v410 = vpop.xlane.xlu0 %409
    %v411 = vsel %vm143, %v104, 0.0
    %412 = vadd.xlane.f32.xlu0 %v411
    %v413 = vpop.xlane.xlu0 %412
    %v414 = vsel %vm143, %v105, 0.0
    %415 = vadd.xlane.f32.xlu0 %v414
    %v416 = vpop.xlane.xlu0 %415
    %v417 = vsel %vm143, %v106, 0.0
    %418 = vadd.xlane.f32.xlu0 %v417
    %v419 = vpop.xlane.xlu0 %418
    %v420 = vsel %vm143, %v107, 0.0
    %421 = vadd.xlane.f32.xlu0 %v420
    %v422 = vpop.xlane.xlu0 %421
    %v423 = vsel %vm143, %v108, 0.0
    %424 = vadd.xlane.f32.xlu0 %v423
    %v425 = vpop.xlane.xlu0 %424
    %v426 = vsel %vm143, %v109, 0.0
    %427 = vadd.xlane.f32.xlu0 %v426
    %v428 = vpop.xlane.xlu0 %427
    %v429 = vsel %vm143, %v110, 0.0
    %430 = vadd.xlane.f32.xlu0 %v429
    %v431 = vpop.xlane.xlu0 %430
    %v432 = vsel %vm143, %v111, 0.0
    %433 = vadd.xlane.f32.xlu0 %v432
    %v434 = vpop.xlane.xlu0 %433
    %v435 = vsel %vm143, %v112, 0.0
    %436 = vadd.xlane.f32.xlu0 %v435
    %v437 = vpop.xlane.xlu0 %436
    %v438 = vsel %vm143, %v113, 0.0
    %439 = vadd.xlane.f32.xlu0 %v438
    %v440 = vpop.xlane.xlu0 %439
    %v441 = vsel %vm143, %v114, 0.0
    %442 = vadd.xlane.f32.xlu0 %v441
    %v443 = vpop.xlane.xlu0 %442
    %v444 = vsel %vm143, %v115, 0.0
    %445 = vadd.xlane.f32.xlu0 %v444
    %v446 = vpop.xlane.xlu0 %445
    %v447 = vsel %vm143, %v116, 0.0
    %448 = vadd.xlane.f32.xlu0 %v447
    %v449 = vpop.xlane.xlu0 %448
    %v450 = vsel %vm143, %v117, 0.0
    %451 = vadd.xlane.f32.xlu0 %v450
    %v452 = vpop.xlane.xlu0 %451
    %v453 = vsel %vm143, %v118, 0.0
    %454 = vadd.xlane.f32.xlu0 %v453
    %v455 = vpop.xlane.xlu0 %454
    %v456 = vsel %vm143, %v119, 0.0
    %457 = vadd.xlane.f32.xlu0 %v456
    %v458 = vpop.xlane.xlu0 %457
    %v459 = vsel %vm143, %v120, 0.0
    %460 = vadd.xlane.f32.xlu0 %v459
    %v461 = vpop.xlane.xlu0 %460
    %v462 = vsel %vm143, %v121, 0.0
    %463 = vadd.xlane.f32.xlu0 %v462
    %v464 = vpop.xlane.xlu0 %463
    %v465 = vsel %vm143, %v122, 0.0
    %466 = vadd.xlane.f32.xlu0 %v465
    %v467 = vpop.xlane.xlu0 %466
    %v468 = vsel %vm143, %v123, 0.0
    %469 = vadd.xlane.f32.xlu0 %v468
    %v470 = vpop.xlane.xlu0 %469
    %v471 = vsel %vm143, %v124, 0.0
    %472 = vadd.xlane.f32.xlu0 %v471
    %v473 = vpop.xlane.xlu0 %472
    %v474 = vsel %vm143, %v125, 0.0
    %475 = vadd.xlane.f32.xlu0 %v474
    %v476 = vpop.xlane.xlu0 %475
    %v477 = vsel %vm143, %v126, 0.0
    %478 = vadd.xlane.f32.xlu0 %v477
    %v479 = vpop.xlane.xlu0 %478
    %v480 = vsel %vm143, %v127, 0.0
    %481 = vadd.xlane.f32.xlu0 %v480
    %v482 = vpop.xlane.xlu0 %481
    %v483 = vsel %vm143, %v128, 0.0
    %484 = vadd.xlane.f32.xlu0 %v483
    %v485 = vpop.xlane.xlu0 %484
    %v486 = vsel %vm143, %v129, 0.0
    %487 = vadd.xlane.f32.xlu0 %v486
    %v488 = vpop.xlane.xlu0 %487
    %v489 = vsel %vm143, %v130, 0.0
    %490 = vadd.xlane.f32.xlu0 %v489
    %v491 = vpop.xlane.xlu0 %490
    %v492 = vsel %vm143, %v131, 0.0
    %493 = vadd.xlane.f32.xlu0 %v492
    %v494 = vpop.xlane.xlu0 %493
    %v495 = vsel %vm143, %v132, 0.0
    %496 = vadd.xlane.f32.xlu0 %v495
    %v497 = vpop.xlane.xlu0 %496
    %v498 = vsel %vm143, %v133, 0.0
    %499 = vadd.xlane.f32.xlu0 %v498
    %v500 = vpop.xlane.xlu0 %499
    %v501 = vsel %vm143, %v134, 0.0
    %502 = vadd.xlane.f32.xlu0 %v501
    %v503 = vpop.xlane.xlu0 %502
    %v504 = vsel %vm143, %v135, 0.0
    %505 = vadd.xlane.f32.xlu0 %v504
    %v506 = vpop.xlane.xlu0 %505
    %v507 = vsel %vm143, %v136, 0.0
    %508 = vadd.xlane.f32.xlu0 %v507
    %v509 = vpop.xlane.xlu0 %508
    %v510 = vsel %vm143, %v137, 0.0
    %511 = vadd.xlane.f32.xlu0 %v510
    %v512 = vpop.xlane.xlu0 %511
    %v513 = vsel %vm143, %v138, 0.0
    %514 = vadd.xlane.f32.xlu0 %v513
    %v515 = vpop.xlane.xlu0 %514
    %v516 = vsel %vm143, %v139, 0.0
    %517 = vadd.xlane.f32.xlu0 %v516
    %v518 = vpop.xlane.xlu0 %517
    %v519 = vsel %vm143, %v140, 0.0
    %520 = vadd.xlane.f32.xlu0 %v519
    %v521 = vpop.xlane.xlu0 %520
    %v522 = vsel %vm143, %v141, 0.0
    %523 = vadd.xlane.f32.xlu0 %v522
    %v524 = vpop.xlane.xlu0 %523
    %v525 = vsel %vm143, %v142, 0.0
    %526 = vadd.xlane.f32.xlu0 %v525
    %v527 = vpop.xlane.xlu0 %526
    %v528 = vmul.f32 %v146, 0.015625
    %v529 = vmul.f32 %v149, 0.015625
    %v530 = vmul.f32 %v152, 0.015625
    %v531 = vmul.f32 %v155, 0.015625
    %v532 = vmul.f32 %v158, 0.015625
    %v533 = vmul.f32 %v161, 0.015625
    %v534 = vmul.f32 %v164, 0.015625
    %v535 = vmul.f32 %v167, 0.015625
    %v536 = vmul.f32 %v170, 0.015625
    %v537 = vmul.f32 %v173, 0.015625
    %v538 = vmul.f32 %v176, 0.015625
    %v539 = vmul.f32 %v179, 0.015625
    %v540 = vmul.f32 %v182, 0.015625
    %v541 = vmul.f32 %v185, 0.015625
    %v542 = vmul.f32 %v188, 0.015625
    %v543 = vmul.f32 %v191, 0.015625
    %v544 = vmul.f32 %v194, 0.015625
    %v545 = vmul.f32 %v197, 0.015625
    %v546 = vmul.f32 %v200, 0.015625
    %v547 = vmul.f32 %v203, 0.015625
    %v548 = vmul.f32 %v206, 0.015625
    %v549 = vmul.f32 %v209, 0.015625
    %v550 = vmul.f32 %v212, 0.015625
    %v551 = vmul.f32 %v215, 0.015625
    %v552 = vmul.f32 %v218, 0.015625
    %v553 = vmul.f32 %v221, 0.015625
    %v554 = vmul.f32 %v224, 0.015625
    %v555 = vmul.f32 %v227, 0.015625
    %v556 = vmul.f32 %v230, 0.015625
    %v557 = vmul.f32 %v233, 0.015625
    %v558 = vmul.f32 %v236, 0.015625
    %v559 = vmul.f32 %v239, 0.015625
    %v560 = vmul.f32 %v242, 0.015625
    %v561 = vmul.f32 %v245, 0.015625
    %v562 = vmul.f32 %v248, 0.015625
    %v563 = vmul.f32 %v251, 0.015625
    %v564 = vmul.f32 %v254, 0.015625
    %v565 = vmul.f32 %v257, 0.015625
    %v566 = vmul.f32 %v260, 0.015625
    %v567 = vmul.f32 %v263, 0.015625
    %v568 = vmul.f32 %v266, 0.015625
    %v569 = vmul.f32 %v269, 0.015625
    %v570 = vmul.f32 %v272, 0.015625
    %v571 = vmul.f32 %v275, 0.015625
    %v572 = vmul.f32 %v278, 0.015625
    %v573 = vmul.f32 %v281, 0.015625
    %v574 = vmul.f32 %v284, 0.015625
    %v575 = vmul.f32 %v287, 0.015625
    %v576 = vmul.f32 %v290, 0.015625
    %v577 = vmul.f32 %v293, 0.015625
    %v578 = vmul.f32 %v296, 0.015625
    %v579 = vmul.f32 %v299, 0.015625
    %v580 = vmul.f32 %v302, 0.015625
    %v581 = vmul.f32 %v305, 0.015625
    %v582 = vmul.f32 %v308, 0.015625
    %v583 = vmul.f32 %v311, 0.015625
    %v584 = vmul.f32 %v314, 0.015625
    %v585 = vmul.f32 %v317, 0.015625
    %v586 = vmul.f32 %v320, 0.015625
    %v587 = vmul.f32 %v323, 0.015625
    %v588 = vmul.f32 %v326, 0.015625
    %v589 = vmul.f32 %v329, 0.015625
    %v590 = vmul.f32 %v332, 0.015625
    %v591 = vmul.f32 %v335, 0.015625
    %v592 = vmul.f32 %v338, 0.015625
    %v593 = vmul.f32 %v341, 0.015625
    %v594 = vmul.f32 %v344, 0.015625
    %v595 = vmul.f32 %v347, 0.015625
    %v596 = vmul.f32 %v350, 0.015625
    %v597 = vmul.f32 %v353, 0.015625
    %v598 = vmul.f32 %v356, 0.015625
    %v599 = vmul.f32 %v359, 0.015625
    %v600 = vmul.f32 %v362, 0.015625
    %v601 = vmul.f32 %v365, 0.015625
    %v602 = vmul.f32 %v368, 0.015625
    %v603 = vmul.f32 %v371, 0.015625
    %v604 = vmul.f32 %v374, 0.015625
    %v605 = vmul.f32 %v377, 0.015625
    %v606 = vmul.f32 %v380, 0.015625
    %v607 = vmul.f32 %v383, 0.015625
    %v608 = vmul.f32 %v386, 0.015625
    %v609 = vmul.f32 %v389, 0.015625
    %v610 = vmul.f32 %v392, 0.015625
    %v611 = vmul.f32 %v395, 0.015625
    %v612 = vmul.f32 %v398, 0.015625
    %v613 = vmul.f32 %v401, 0.015625
    %v614 = vmul.f32 %v404, 0.015625
    %v615 = vmul.f32 %v407, 0.015625
    %v616 = vmul.f32 %v410, 0.015625
    %v617 = vmul.f32 %v413, 0.015625
    %v618 = vmul.f32 %v416, 0.015625
    %v619 = vmul.f32 %v419, 0.015625
    %v620 = vmul.f32 %v422, 0.015625
    %v621 = vmul.f32 %v425, 0.015625
    %v622 = vmul.f32 %v428, 0.015625
    %v623 = vmul.f32 %v431, 0.015625
    %v624 = vmul.f32 %v434, 0.015625
    %v625 = vmul.f32 %v437, 0.015625
    %v626 = vmul.f32 %v440, 0.015625
    %v627 = vmul.f32 %v443, 0.015625
    %v628 = vmul.f32 %v446, 0.015625
    %v629 = vmul.f32 %v449, 0.015625
    %v630 = vmul.f32 %v452, 0.015625
    %v631 = vmul.f32 %v455, 0.015625
    %v632 = vmul.f32 %v458, 0.015625
    %v633 = vmul.f32 %v461, 0.015625
    %v634 = vmul.f32 %v464, 0.015625
    %v635 = vmul.f32 %v467, 0.015625
    %v636 = vmul.f32 %v470, 0.015625
    %v637 = vmul.f32 %v473, 0.015625
    %v638 = vmul.f32 %v476, 0.015625
    %v639 = vmul.f32 %v479, 0.015625
    %v640 = vmul.f32 %v482, 0.015625
    %v641 = vmul.f32 %v485, 0.015625
    %v642 = vmul.f32 %v488, 0.015625
    %v643 = vmul.f32 %v491, 0.015625
    %v644 = vmul.f32 %v494, 0.015625
    %v645 = vmul.f32 %v497, 0.015625
    %v646 = vmul.f32 %v500, 0.015625
    %v647 = vmul.f32 %v503, 0.015625
    %v648 = vmul.f32 %v506, 0.015625
    %v649 = vmul.f32 %v509, 0.015625
    %v650 = vmul.f32 %v512, 0.015625
    %v651 = vmul.f32 %v515, 0.015625
    %v652 = vmul.f32 %v518, 0.015625
    %v653 = vmul.f32 %v521, 0.015625
    %v654 = vmul.f32 %v524, 0.015625
    %v655 = vmul.f32 %v527, 0.015625
    %v656 = vld [vmem:[%s1] sm:$0xff]
    %v657 = vld [vmem:[%s1 + $0x8] sm:$0xff]
    %v658 = vld [vmem:[%s1 + $0x10] sm:$0xff]
    %v659 = vld [vmem:[%s1 + $0x18] sm:$0xff]
    %v660 = vld [vmem:[%s1 + $0x20] sm:$0xff]
    %v661 = vld [vmem:[%s1 + $0x28] sm:$0xff]
    %v662 = vld [vmem:[%s1 + $0x30] sm:$0xff]
    %v663 = vld [vmem:[%s1 + $0x38] sm:$0xff]
    %v664 = vld [vmem:[%s1 + $0x40] sm:$0xff]
    %v665 = vld [vmem:[%s1 + $0x48] sm:$0xff]
    %v666 = vld [vmem:[%s1 + $0x50] sm:$0xff]
    %v667 = vld [vmem:[%s1 + $0x58] sm:$0xff]
    %v668 = vld [vmem:[%s1 + $0x60] sm:$0xff]
    %v669 = vld [vmem:[%s1 + $0x68] sm:$0xff]
    %v670 = vld [vmem:[%s1 + $0x70] sm:$0xff]
    %v671 = vld [vmem:[%s1 + $0x78] sm:$0xff]
    %v672 = vld [vmem:[%s1 + $0x80] sm:$0xff]
    %v673 = vld [vmem:[%s1 + $0x88] sm:$0xff]
    %v674 = vld [vmem:[%s1 + $0x90] sm:$0xff]
    %v675 = vld [vmem:[%s1 + $0x98] sm:$0xff]
    %v676 = vld [vmem:[%s1 + $0xa0] sm:$0xff]
    %v677 = vld [vmem:[%s1 + $0xa8] sm:$0xff]
    %v678 = vld [vmem:[%s1 + $0xb0] sm:$0xff]
    %v679 = vld [vmem:[%s1 + $0xb8] sm:$0xff]
    %v680 = vld [vmem:[%s1 + $0xc0] sm:$0xff]
    %v681 = vld [vmem:[%s1 + $0xc8] sm:$0xff]
    %v682 = vld [vmem:[%s1 + $0xd0] sm:$0xff]
    %v683 = vld [vmem:[%s1 + $0xd8] sm:$0xff]
    %v684 = vld [vmem:[%s1 + $0xe0] sm:$0xff]
    %v685 = vld [vmem:[%s1 + $0xe8] sm:$0xff]
    %v686 = vld [vmem:[%s1 + $0xf0] sm:$0xff]
    %v687 = vld [vmem:[%s1 + $0xf8] sm:$0xff]
    %v688 = vld [vmem:[%s2] sm:$0x1]
    %v690 = vlaneseq
    %v691 = vshrl.u32 %v690, 7
    %v692 = vsub.s32 0, %v691
    %v693 = vrot.slane %v688, %v692
    %v823 = vlaneseq
    %v824 = vand.u32 %v823, 127
    %v825 = vlaneseq
    %v826 = vshrl.u32 %v825, 7
    %v827 = vsub.s32 %v824, %v826
    %v828 = vrot.slane %v528, %v827
    %v829 = vadd.s32 %v824, 4294967288
    %v830 = vlaneseq
    %v831 = vshrl.u32 %v830, 7
    %v832 = vsub.s32 %v829, %v831
    %v833 = vrot.slane %v529, %v832
    %vm834 = vcmask 130112
    %v835 = vsel %vm834, %v833, %v828
    %v836 = vadd.s32 %v824, 4294967280
    %v837 = vlaneseq
    %v838 = vshrl.u32 %v837, 7
    %v839 = vsub.s32 %v836, %v838
    %v840 = vrot.slane %v530, %v839
    %vm841 = vcmask 195712
    %v842 = vsel %vm841, %v840, %v835
    %v843 = vadd.s32 %v824, 4294967272
    %v844 = vlaneseq
    %v845 = vshrl.u32 %v844, 7
    %v846 = vsub.s32 %v843, %v845
    %v847 = vrot.slane %v531, %v846
    %vm848 = vcmask 261312
    %v849 = vsel %vm848, %v847, %v842
    %v850 = vadd.s32 %v824, 4294967264
    %v851 = vlaneseq
    %v852 = vshrl.u32 %v851, 7
    %v853 = vsub.s32 %v850, %v852
    %v854 = vrot.slane %v532, %v853
    %vm855 = vcmask 326912
    %v856 = vsel %vm855, %v854, %v849
    %v857 = vadd.s32 %v824, 4294967256
    %v858 = vlaneseq
    %v859 = vshrl.u32 %v858, 7
    %v860 = vsub.s32 %v857, %v859
    %v861 = vrot.slane %v533, %v860
    %vm862 = vcmask 392512
    %v863 = vsel %vm862, %v861, %v856
    %v864 = vadd.s32 %v824, 4294967248
    %v865 = vlaneseq
    %v866 = vshrl.u32 %v865, 7
    %v867 = vsub.s32 %v864, %v866
    %v868 = vrot.slane %v534, %v867
    %vm869 = vcmask 458112
    %v870 = vsel %vm869, %v868, %v863
    %v871 = vadd.s32 %v824, 4294967240
    %v872 = vlaneseq
    %v873 = vshrl.u32 %v872, 7
    %v874 = vsub.s32 %v871, %v873
    %v875 = vrot.slane %v535, %v874
    %vm876 = vcmask 523712
    %v877 = vsel %vm876, %v875, %v870
    %v878 = vadd.s32 %v824, 4294967232
    %v879 = vlaneseq
    %v880 = vshrl.u32 %v879, 7
    %v881 = vsub.s32 %v878, %v880
    %v882 = vrot.slane %v536, %v881
    %vm883 = vcmask 589312
    %v884 = vsel %vm883, %v882, %v877
    %v885 = vadd.s32 %v824, 4294967224
    %v886 = vlaneseq
    %v887 = vshrl.u32 %v886, 7
    %v888 = vsub.s32 %v885, %v887
    %v889 = vrot.slane %v537, %v888
    %vm890 = vcmask 654912
    %v891 = vsel %vm890, %v889, %v884
    %v892 = vadd.s32 %v824, 4294967216
    %v893 = vlaneseq
    %v894 = vshrl.u32 %v893, 7
    %v895 = vsub.s32 %v892, %v894
    %v896 = vrot.slane %v538, %v895
    %vm897 = vcmask 720512
    %v898 = vsel %vm897, %v896, %v891
    %v899 = vadd.s32 %v824, 4294967208
    %v900 = vlaneseq
    %v901 = vshrl.u32 %v900, 7
    %v902 = vsub.s32 %v899, %v901
    %v903 = vrot.slane %v539, %v902
    %vm904 = vcmask 786112
    %v905 = vsel %vm904, %v903, %v898
    %v906 = vadd.s32 %v824, 4294967200
    %v907 = vlaneseq
    %v908 = vshrl.u32 %v907, 7
    %v909 = vsub.s32 %v906, %v908
    %v910 = vrot.slane %v540, %v909
    %vm911 = vcmask 851712
    %v912 = vsel %vm911, %v910, %v905
    %v913 = vadd.s32 %v824, 4294967192
    %v914 = vlaneseq
    %v915 = vshrl.u32 %v914, 7
    %v916 = vsub.s32 %v913, %v915
    %v917 = vrot.slane %v541, %v916
    %vm918 = vcmask 917312
    %v919 = vsel %vm918, %v917, %v912
    %v920 = vadd.s32 %v824, 4294967184
    %v921 = vlaneseq
    %v922 = vshrl.u32 %v921, 7
    %v923 = vsub.s32 %v920, %v922
    %v924 = vrot.slane %v542, %v923
    %vm925 = vcmask 982912
    %v926 = vsel %vm925, %v924, %v919
    %v927 = vadd.s32 %v824, 4294967176
    %v928 = vlaneseq
    %v929 = vshrl.u32 %v928, 7
    %v930 = vsub.s32 %v927, %v929
    %v931 = vrot.slane %v543, %v930
    %vm932 = vcmask 1048512
    %v933 = vsel %vm932, %v931, %v926
    %v934 = vlaneseq
    %v935 = vshrl.u32 %v934, 7
    %v936 = vsub.s32 %v824, %v935
    %v937 = vrot.slane %v544, %v936
    %v938 = vlaneseq
    %v939 = vshrl.u32 %v938, 7
    %v940 = vsub.s32 %v829, %v939
    %v941 = vrot.slane %v545, %v940
    %v942 = vsel %vm834, %v941, %v937
    %v943 = vlaneseq
    %v944 = vshrl.u32 %v943, 7
    %v945 = vsub.s32 %v836, %v944
    %v946 = vrot.slane %v546, %v945
    %v947 = vsel %vm841, %v946, %v942
    %v948 = vlaneseq
    %v949 = vshrl.u32 %v948, 7
    %v950 = vsub.s32 %v843, %v949
    %v951 = vrot.slane %v547, %v950
    %v952 = vsel %vm848, %v951, %v947
    %v953 = vlaneseq
    %v954 = vshrl.u32 %v953, 7
    %v955 = vsub.s32 %v850, %v954
    %v956 = vrot.slane %v548, %v955
    %v957 = vsel %vm855, %v956, %v952
    %v958 = vlaneseq
    %v959 = vshrl.u32 %v958, 7
    %v960 = vsub.s32 %v857, %v959
    %v961 = vrot.slane %v549, %v960
    %v962 = vsel %vm862, %v961, %v957
    %v963 = vlaneseq
    %v964 = vshrl.u32 %v963, 7
    %v965 = vsub.s32 %v864, %v964
    %v966 = vrot.slane %v550, %v965
    %v967 = vsel %vm869, %v966, %v962
    %v968 = vlaneseq
    %v969 = vshrl.u32 %v968, 7
    %v970 = vsub.s32 %v871, %v969
    %v971 = vrot.slane %v551, %v970
    %v972 = vsel %vm876, %v971, %v967
    %v973 = vlaneseq
    %v974 = vshrl.u32 %v973, 7
    %v975 = vsub.s32 %v878, %v974
    %v976 = vrot.slane %v552, %v975
    %v977 = vsel %vm883, %v976, %v972
    %v978 = vlaneseq
    %v979 = vshrl.u32 %v978, 7
    %v980 = vsub.s32 %v885, %v979
    %v981 = vrot.slane %v553, %v980
    %v982 = vsel %vm890, %v981, %v977
    %v983 = vlaneseq
    %v984 = vshrl.u32 %v983, 7
    %v985 = vsub.s32 %v892, %v984
    %v986 = vrot.slane %v554, %v985
    %v987 = vsel %vm897, %v986, %v982
    %v988 = vlaneseq
    %v989 = vshrl.u32 %v988, 7
    %v990 = vsub.s32 %v899, %v989
    %v991 = vrot.slane %v555, %v990
    %v992 = vsel %vm904, %v991, %v987
    %v993 = vlaneseq
    %v994 = vshrl.u32 %v993, 7
    %v995 = vsub.s32 %v906, %v994
    %v996 = vrot.slane %v556, %v995
    %v997 = vsel %vm911, %v996, %v992
    %v998 = vlaneseq
    %v999 = vshrl.u32 %v998, 7
    %v1000 = vsub.s32 %v913, %v999
    %v1001 = vrot.slane %v557, %v1000
    %v1002 = vsel %vm918, %v1001, %v997
    %v1003 = vlaneseq
    %v1004 = vshrl.u32 %v1003, 7
    %v1005 = vsub.s32 %v920, %v1004
    %v1006 = vrot.slane %v558, %v1005
    %v1007 = vsel %vm925, %v1006, %v1002
    %v1008 = vlaneseq
    %v1009 = vshrl.u32 %v1008, 7
    %v1010 = vsub.s32 %v927, %v1009
    %v1011 = vrot.slane %v559, %v1010
    %v1012 = vsel %vm932, %v1011, %v1007
    %v1013 = vlaneseq
    %v1014 = vshrl.u32 %v1013, 7
    %v1015 = vsub.s32 %v824, %v1014
    %v1016 = vrot.slane %v560, %v1015
    %v1017 = vlaneseq
    %v1018 = vshrl.u32 %v1017, 7
    %v1019 = vsub.s32 %v829, %v1018
    %v1020 = vrot.slane %v561, %v1019
    %v1021 = vsel %vm834, %v1020, %v1016
    %v1022 = vlaneseq
    %v1023 = vshrl.u32 %v1022, 7
    %v1024 = vsub.s32 %v836, %v1023
    %v1025 = vrot.slane %v562, %v1024
    %v1026 = vsel %vm841, %v1025, %v1021
    %v1027 = vlaneseq
    %v1028 = vshrl.u32 %v1027, 7
    %v1029 = vsub.s32 %v843, %v1028
    %v1030 = vrot.slane %v563, %v1029
    %v1031 = vsel %vm848, %v1030, %v1026
    %v1032 = vlaneseq
    %v1033 = vshrl.u32 %v1032, 7
    %v1034 = vsub.s32 %v850, %v1033
    %v1035 = vrot.slane %v564, %v1034
    %v1036 = vsel %vm855, %v1035, %v1031
    %v1037 = vlaneseq
    %v1038 = vshrl.u32 %v1037, 7
    %v1039 = vsub.s32 %v857, %v1038
    %v1040 = vrot.slane %v565, %v1039
    %v1041 = vsel %vm862, %v1040, %v1036
    %v1042 = vlaneseq
    %v1043 = vshrl.u32 %v1042, 7
    %v1044 = vsub.s32 %v864, %v1043
    %v1045 = vrot.slane %v566, %v1044
    %v1046 = vsel %vm869, %v1045, %v1041
    %v1047 = vlaneseq
    %v1048 = vshrl.u32 %v1047, 7
    %v1049 = vsub.s32 %v871, %v1048
    %v1050 = vrot.slane %v567, %v1049
    %v1051 = vsel %vm876, %v1050, %v1046
    %v1052 = vlaneseq
    %v1053 = vshrl.u32 %v1052, 7
    %v1054 = vsub.s32 %v878, %v1053
    %v1055 = vrot.slane %v568, %v1054
    %v1056 = vsel %vm883, %v1055, %v1051
    %v1057 = vlaneseq
    %v1058 = vshrl.u32 %v1057, 7
    %v1059 = vsub.s32 %v885, %v1058
    %v1060 = vrot.slane %v569, %v1059
    %v1061 = vsel %vm890, %v1060, %v1056
    %v1062 = vlaneseq
    %v1063 = vshrl.u32 %v1062, 7
    %v1064 = vsub.s32 %v892, %v1063
    %v1065 = vrot.slane %v570, %v1064
    %v1066 = vsel %vm897, %v1065, %v1061
    %v1067 = vlaneseq
    %v1068 = vshrl.u32 %v1067, 7
    %v1069 = vsub.s32 %v899, %v1068
    %v1070 = vrot.slane %v571, %v1069
    %v1071 = vsel %vm904, %v1070, %v1066
    %v1072 = vlaneseq
    %v1073 = vshrl.u32 %v1072, 7
    %v1074 = vsub.s32 %v906, %v1073
    %v1075 = vrot.slane %v572, %v1074
    %v1076 = vsel %vm911, %v1075, %v1071
    %v1077 = vlaneseq
    %v1078 = vshrl.u32 %v1077, 7
    %v1079 = vsub.s32 %v913, %v1078
    %v1080 = vrot.slane %v573, %v1079
    %v1081 = vsel %vm918, %v1080, %v1076
    %v1082 = vlaneseq
    %v1083 = vshrl.u32 %v1082, 7
    %v1084 = vsub.s32 %v920, %v1083
    %v1085 = vrot.slane %v574, %v1084
    %v1086 = vsel %vm925, %v1085, %v1081
    %v1087 = vlaneseq
    %v1088 = vshrl.u32 %v1087, 7
    %v1089 = vsub.s32 %v927, %v1088
    %v1090 = vrot.slane %v575, %v1089
    %v1091 = vsel %vm932, %v1090, %v1086
    %v1092 = vlaneseq
    %v1093 = vshrl.u32 %v1092, 7
    %v1094 = vsub.s32 %v824, %v1093
    %v1095 = vrot.slane %v576, %v1094
    %v1096 = vlaneseq
    %v1097 = vshrl.u32 %v1096, 7
    %v1098 = vsub.s32 %v829, %v1097
    %v1099 = vrot.slane %v577, %v1098
    %v1100 = vsel %vm834, %v1099, %v1095
    %v1101 = vlaneseq
    %v1102 = vshrl.u32 %v1101, 7
    %v1103 = vsub.s32 %v836, %v1102
    %v1104 = vrot.slane %v578, %v1103
    %v1105 = vsel %vm841, %v1104, %v1100
    %v1106 = vlaneseq
    %v1107 = vshrl.u32 %v1106, 7
    %v1108 = vsub.s32 %v843, %v1107
    %v1109 = vrot.slane %v579, %v1108
    %v1110 = vsel %vm848, %v1109, %v1105
    %v1111 = vlaneseq
    %v1112 = vshrl.u32 %v1111, 7
    %v1113 = vsub.s32 %v850, %v1112
    %v1114 = vrot.slane %v580, %v1113
    %v1115 = vsel %vm855, %v1114, %v1110
    %v1116 = vlaneseq
    %v1117 = vshrl.u32 %v1116, 7
    %v1118 = vsub.s32 %v857, %v1117
    %v1119 = vrot.slane %v581, %v1118
    %v1120 = vsel %vm862, %v1119, %v1115
    %v1121 = vlaneseq
    %v1122 = vshrl.u32 %v1121, 7
    %v1123 = vsub.s32 %v864, %v1122
    %v1124 = vrot.slane %v582, %v1123
    %v1125 = vsel %vm869, %v1124, %v1120
    %v1126 = vlaneseq
    %v1127 = vshrl.u32 %v1126, 7
    %v1128 = vsub.s32 %v871, %v1127
    %v1129 = vrot.slane %v583, %v1128
    %v1130 = vsel %vm876, %v1129, %v1125
    %v1131 = vlaneseq
    %v1132 = vshrl.u32 %v1131, 7
    %v1133 = vsub.s32 %v878, %v1132
    %v1134 = vrot.slane %v584, %v1133
    %v1135 = vsel %vm883, %v1134, %v1130
    %v1136 = vlaneseq
    %v1137 = vshrl.u32 %v1136, 7
    %v1138 = vsub.s32 %v885, %v1137
    %v1139 = vrot.slane %v585, %v1138
    %v1140 = vsel %vm890, %v1139, %v1135
    %v1141 = vlaneseq
    %v1142 = vshrl.u32 %v1141, 7
    %v1143 = vsub.s32 %v892, %v1142
    %v1144 = vrot.slane %v586, %v1143
    %v1145 = vsel %vm897, %v1144, %v1140
    %v1146 = vlaneseq
    %v1147 = vshrl.u32 %v1146, 7
    %v1148 = vsub.s32 %v899, %v1147
    %v1149 = vrot.slane %v587, %v1148
    %v1150 = vsel %vm904, %v1149, %v1145
    %v1151 = vlaneseq
    %v1152 = vshrl.u32 %v1151, 7
    %v1153 = vsub.s32 %v906, %v1152
    %v1154 = vrot.slane %v588, %v1153
    %v1155 = vsel %vm911, %v1154, %v1150
    %v1156 = vlaneseq
    %v1157 = vshrl.u32 %v1156, 7
    %v1158 = vsub.s32 %v913, %v1157
    %v1159 = vrot.slane %v589, %v1158
    %v1160 = vsel %vm918, %v1159, %v1155
    %v1161 = vlaneseq
    %v1162 = vshrl.u32 %v1161, 7
    %v1163 = vsub.s32 %v920, %v1162
    %v1164 = vrot.slane %v590, %v1163
    %v1165 = vsel %vm925, %v1164, %v1160
    %v1166 = vlaneseq
    %v1167 = vshrl.u32 %v1166, 7
    %v1168 = vsub.s32 %v927, %v1167
    %v1169 = vrot.slane %v591, %v1168
    %v1170 = vsel %vm932, %v1169, %v1165
    %v1171 = vlaneseq
    %v1172 = vshrl.u32 %v1171, 7
    %v1173 = vsub.s32 %v824, %v1172
    %v1174 = vrot.slane %v592, %v1173
    %v1175 = vlaneseq
    %v1176 = vshrl.u32 %v1175, 7
    %v1177 = vsub.s32 %v829, %v1176
    %v1178 = vrot.slane %v593, %v1177
    %v1179 = vsel %vm834, %v1178, %v1174
    %v1180 = vlaneseq
    %v1181 = vshrl.u32 %v1180, 7
    %v1182 = vsub.s32 %v836, %v1181
    %v1183 = vrot.slane %v594, %v1182
    %v1184 = vsel %vm841, %v1183, %v1179
    %v1185 = vlaneseq
    %v1186 = vshrl.u32 %v1185, 7
    %v1187 = vsub.s32 %v843, %v1186
    %v1188 = vrot.slane %v595, %v1187
    %v1189 = vsel %vm848, %v1188, %v1184
    %v1190 = vlaneseq
    %v1191 = vshrl.u32 %v1190, 7
    %v1192 = vsub.s32 %v850, %v1191
    %v1193 = vrot.slane %v596, %v1192
    %v1194 = vsel %vm855, %v1193, %v1189
    %v1195 = vlaneseq
    %v1196 = vshrl.u32 %v1195, 7
    %v1197 = vsub.s32 %v857, %v1196
    %v1198 = vrot.slane %v597, %v1197
    %v1199 = vsel %vm862, %v1198, %v1194
    %v1200 = vlaneseq
    %v1201 = vshrl.u32 %v1200, 7
    %v1202 = vsub.s32 %v864, %v1201
    %v1203 = vrot.slane %v598, %v1202
    %v1204 = vsel %vm869, %v1203, %v1199
    %v1205 = vlaneseq
    %v1206 = vshrl.u32 %v1205, 7
    %v1207 = vsub.s32 %v871, %v1206
    %v1208 = vrot.slane %v599, %v1207
    %v1209 = vsel %vm876, %v1208, %v1204
    %v1210 = vlaneseq
    %v1211 = vshrl.u32 %v1210, 7
    %v1212 = vsub.s32 %v878, %v1211
    %v1213 = vrot.slane %v600, %v1212
    %v1214 = vsel %vm883, %v1213, %v1209
    %v1215 = vlaneseq
    %v1216 = vshrl.u32 %v1215, 7
    %v1217 = vsub.s32 %v885, %v1216
    %v1218 = vrot.slane %v601, %v1217
    %v1219 = vsel %vm890, %v1218, %v1214
    %v1220 = vlaneseq
    %v1221 = vshrl.u32 %v1220, 7
    %v1222 = vsub.s32 %v892, %v1221
    %v1223 = vrot.slane %v602, %v1222
    %v1224 = vsel %vm897, %v1223, %v1219
    %v1225 = vlaneseq
    %v1226 = vshrl.u32 %v1225, 7
    %v1227 = vsub.s32 %v899, %v1226
    %v1228 = vrot.slane %v603, %v1227
    %v1229 = vsel %vm904, %v1228, %v1224
    %v1230 = vlaneseq
    %v1231 = vshrl.u32 %v1230, 7
    %v1232 = vsub.s32 %v906, %v1231
    %v1233 = vrot.slane %v604, %v1232
    %v1234 = vsel %vm911, %v1233, %v1229
    %v1235 = vlaneseq
    %v1236 = vshrl.u32 %v1235, 7
    %v1237 = vsub.s32 %v913, %v1236
    %v1238 = vrot.slane %v605, %v1237
    %v1239 = vsel %vm918, %v1238, %v1234
    %v1240 = vlaneseq
    %v1241 = vshrl.u32 %v1240, 7
    %v1242 = vsub.s32 %v920, %v1241
    %v1243 = vrot.slane %v606, %v1242
    %v1244 = vsel %vm925, %v1243, %v1239
    %v1245 = vlaneseq
    %v1246 = vshrl.u32 %v1245, 7
    %v1247 = vsub.s32 %v927, %v1246
    %v1248 = vrot.slane %v607, %v1247
    %v1249 = vsel %vm932, %v1248, %v1244
    %v1250 = vlaneseq
    %v1251 = vshrl.u32 %v1250, 7
    %v1252 = vsub.s32 %v824, %v1251
    %v1253 = vrot.slane %v608, %v1252
    %v1254 = vlaneseq
    %v1255 = vshrl.u32 %v1254, 7
    %v1256 = vsub.s32 %v829, %v1255
    %v1257 = vrot.slane %v609, %v1256
    %v1258 = vsel %vm834, %v1257, %v1253
    %v1259 = vlaneseq
    %v1260 = vshrl.u32 %v1259, 7
    %v1261 = vsub.s32 %v836, %v1260
    %v1262 = vrot.slane %v610, %v1261
    %v1263 = vsel %vm841, %v1262, %v1258
    %v1264 = vlaneseq
    %v1265 = vshrl.u32 %v1264, 7
    %v1266 = vsub.s32 %v843, %v1265
    %v1267 = vrot.slane %v611, %v1266
    %v1268 = vsel %vm848, %v1267, %v1263
    %v1269 = vlaneseq
    %v1270 = vshrl.u32 %v1269, 7
    %v1271 = vsub.s32 %v850, %v1270
    %v1272 = vrot.slane %v612, %v1271
    %v1273 = vsel %vm855, %v1272, %v1268
    %v1274 = vlaneseq
    %v1275 = vshrl.u32 %v1274, 7
    %v1276 = vsub.s32 %v857, %v1275
    %v1277 = vrot.slane %v613, %v1276
    %v1278 = vsel %vm862, %v1277, %v1273
    %v1279 = vlaneseq
    %v1280 = vshrl.u32 %v1279, 7
    %v1281 = vsub.s32 %v864, %v1280
    %v1282 = vrot.slane %v614, %v1281
    %v1283 = vsel %vm869, %v1282, %v1278
    %v1284 = vlaneseq
    %v1285 = vshrl.u32 %v1284, 7
    %v1286 = vsub.s32 %v871, %v1285
    %v1287 = vrot.slane %v615, %v1286
    %v1288 = vsel %vm876, %v1287, %v1283
    %v1289 = vlaneseq
    %v1290 = vshrl.u32 %v1289, 7
    %v1291 = vsub.s32 %v878, %v1290
    %v1292 = vrot.slane %v616, %v1291
    %v1293 = vsel %vm883, %v1292, %v1288
    %v1294 = vlaneseq
    %v1295 = vshrl.u32 %v1294, 7
    %v1296 = vsub.s32 %v885, %v1295
    %v1297 = vrot.slane %v617, %v1296
    %v1298 = vsel %vm890, %v1297, %v1293
    %v1299 = vlaneseq
    %v1300 = vshrl.u32 %v1299, 7
    %v1301 = vsub.s32 %v892, %v1300
    %v1302 = vrot.slane %v618, %v1301
    %v1303 = vsel %vm897, %v1302, %v1298
    %v1304 = vlaneseq
    %v1305 = vshrl.u32 %v1304, 7
    %v1306 = vsub.s32 %v899, %v1305
    %v1307 = vrot.slane %v619, %v1306
    %v1308 = vsel %vm904, %v1307, %v1303
    %v1309 = vlaneseq
    %v1310 = vshrl.u32 %v1309, 7
    %v1311 = vsub.s32 %v906, %v1310
    %v1312 = vrot.slane %v620, %v1311
    %v1313 = vsel %vm911, %v1312, %v1308
    %v1314 = vlaneseq
    %v1315 = vshrl.u32 %v1314, 7
    %v1316 = vsub.s32 %v913, %v1315
    %v1317 = vrot.slane %v621, %v1316
    %v1318 = vsel %vm918, %v1317, %v1313
    %v1319 = vlaneseq
    %v1320 = vshrl.u32 %v1319, 7
    %v1321 = vsub.s32 %v920, %v1320
    %v1322 = vrot.slane %v622, %v1321
    %v1323 = vsel %vm925, %v1322, %v1318
    %v1324 = vlaneseq
    %v1325 = vshrl.u32 %v1324, 7
    %v1326 = vsub.s32 %v927, %v1325
    %v1327 = vrot.slane %v623, %v1326
    %v1328 = vsel %vm932, %v1327, %v1323
    %v1329 = vlaneseq
    %v1330 = vshrl.u32 %v1329, 7
    %v1331 = vsub.s32 %v824, %v1330
    %v1332 = vrot.slane %v624, %v1331
    %v1333 = vlaneseq
    %v1334 = vshrl.u32 %v1333, 7
    %v1335 = vsub.s32 %v829, %v1334
    %v1336 = vrot.slane %v625, %v1335
    %v1337 = vsel %vm834, %v1336, %v1332
    %v1338 = vlaneseq
    %v1339 = vshrl.u32 %v1338, 7
    %v1340 = vsub.s32 %v836, %v1339
    %v1341 = vrot.slane %v626, %v1340
    %v1342 = vsel %vm841, %v1341, %v1337
    %v1343 = vlaneseq
    %v1344 = vshrl.u32 %v1343, 7
    %v1345 = vsub.s32 %v843, %v1344
    %v1346 = vrot.slane %v627, %v1345
    %v1347 = vsel %vm848, %v1346, %v1342
    %v1348 = vlaneseq
    %v1349 = vshrl.u32 %v1348, 7
    %v1350 = vsub.s32 %v850, %v1349
    %v1351 = vrot.slane %v628, %v1350
    %v1352 = vsel %vm855, %v1351, %v1347
    %v1353 = vlaneseq
    %v1354 = vshrl.u32 %v1353, 7
    %v1355 = vsub.s32 %v857, %v1354
    %v1356 = vrot.slane %v629, %v1355
    %v1357 = vsel %vm862, %v1356, %v1352
    %v1358 = vlaneseq
    %v1359 = vshrl.u32 %v1358, 7
    %v1360 = vsub.s32 %v864, %v1359
    %v1361 = vrot.slane %v630, %v1360
    %v1362 = vsel %vm869, %v1361, %v1357
    %v1363 = vlaneseq
    %v1364 = vshrl.u32 %v1363, 7
    %v1365 = vsub.s32 %v871, %v1364
    %v1366 = vrot.slane %v631, %v1365
    %v1367 = vsel %vm876, %v1366, %v1362
    %v1368 = vlaneseq
    %v1369 = vshrl.u32 %v1368, 7
    %v1370 = vsub.s32 %v878, %v1369
    %v1371 = vrot.slane %v632, %v1370
    %v1372 = vsel %vm883, %v1371, %v1367
    %v1373 = vlaneseq
    %v1374 = vshrl.u32 %v1373, 7
    %v1375 = vsub.s32 %v885, %v1374
    %v1376 = vrot.slane %v633, %v1375
    %v1377 = vsel %vm890, %v1376, %v1372
    %v1378 = vlaneseq
    %v1379 = vshrl.u32 %v1378, 7
    %v1380 = vsub.s32 %v892, %v1379
    %v1381 = vrot.slane %v634, %v1380
    %v1382 = vsel %vm897, %v1381, %v1377
    %v1383 = vlaneseq
    %v1384 = vshrl.u32 %v1383, 7
    %v1385 = vsub.s32 %v899, %v1384
    %v1386 = vrot.slane %v635, %v1385
    %v1387 = vsel %vm904, %v1386, %v1382
    %v1388 = vlaneseq
    %v1389 = vshrl.u32 %v1388, 7
    %v1390 = vsub.s32 %v906, %v1389
    %v1391 = vrot.slane %v636, %v1390
    %v1392 = vsel %vm911, %v1391, %v1387
    %v1393 = vlaneseq
    %v1394 = vshrl.u32 %v1393, 7
    %v1395 = vsub.s32 %v913, %v1394
    %v1396 = vrot.slane %v637, %v1395
    %v1397 = vsel %vm918, %v1396, %v1392
    %v1398 = vlaneseq
    %v1399 = vshrl.u32 %v1398, 7
    %v1400 = vsub.s32 %v920, %v1399
    %v1401 = vrot.slane %v638, %v1400
    %v1402 = vsel %vm925, %v1401, %v1397
    %v1403 = vlaneseq
    %v1404 = vshrl.u32 %v1403, 7
    %v1405 = vsub.s32 %v927, %v1404
    %v1406 = vrot.slane %v639, %v1405
    %v1407 = vsel %vm932, %v1406, %v1402
    %v1408 = vlaneseq
    %v1409 = vshrl.u32 %v1408, 7
    %v1410 = vsub.s32 %v824, %v1409
    %v1411 = vrot.slane %v640, %v1410
    %v1412 = vlaneseq
    %v1413 = vshrl.u32 %v1412, 7
    %v1414 = vsub.s32 %v829, %v1413
    %v1415 = vrot.slane %v641, %v1414
    %v1416 = vsel %vm834, %v1415, %v1411
    %v1417 = vlaneseq
    %v1418 = vshrl.u32 %v1417, 7
    %v1419 = vsub.s32 %v836, %v1418
    %v1420 = vrot.slane %v642, %v1419
    %v1421 = vsel %vm841, %v1420, %v1416
    %v1422 = vlaneseq
    %v1423 = vshrl.u32 %v1422, 7
    %v1424 = vsub.s32 %v843, %v1423
    %v1425 = vrot.slane %v643, %v1424
    %v1426 = vsel %vm848, %v1425, %v1421
    %v1427 = vlaneseq
    %v1428 = vshrl.u32 %v1427, 7
    %v1429 = vsub.s32 %v850, %v1428
    %v1430 = vrot.slane %v644, %v1429
    %v1431 = vsel %vm855, %v1430, %v1426
    %v1432 = vlaneseq
    %v1433 = vshrl.u32 %v1432, 7
    %v1434 = vsub.s32 %v857, %v1433
    %v1435 = vrot.slane %v645, %v1434
    %v1436 = vsel %vm862, %v1435, %v1431
    %v1437 = vlaneseq
    %v1438 = vshrl.u32 %v1437, 7
    %v1439 = vsub.s32 %v864, %v1438
    %v1440 = vrot.slane %v646, %v1439
    %v1441 = vsel %vm869, %v1440, %v1436
    %v1442 = vlaneseq
    %v1443 = vshrl.u32 %v1442, 7
    %v1444 = vsub.s32 %v871, %v1443
    %v1445 = vrot.slane %v647, %v1444
    %v1446 = vsel %vm876, %v1445, %v1441
    %v1447 = vlaneseq
    %v1448 = vshrl.u32 %v1447, 7
    %v1449 = vsub.s32 %v878, %v1448
    %v1450 = vrot.slane %v648, %v1449
    %v1451 = vsel %vm883, %v1450, %v1446
    %v1452 = vlaneseq
    %v1453 = vshrl.u32 %v1452, 7
    %v1454 = vsub.s32 %v885, %v1453
    %v1455 = vrot.slane %v649, %v1454
    %v1456 = vsel %vm890, %v1455, %v1451
    %v1457 = vlaneseq
    %v1458 = vshrl.u32 %v1457, 7
    %v1459 = vsub.s32 %v892, %v1458
    %v1460 = vrot.slane %v650, %v1459
    %v1461 = vsel %vm897, %v1460, %v1456
    %v1462 = vlaneseq
    %v1463 = vshrl.u32 %v1462, 7
    %v1464 = vsub.s32 %v899, %v1463
    %v1465 = vrot.slane %v651, %v1464
    %v1466 = vsel %vm904, %v1465, %v1461
    %v1467 = vlaneseq
    %v1468 = vshrl.u32 %v1467, 7
    %v1469 = vsub.s32 %v906, %v1468
    %v1470 = vrot.slane %v652, %v1469
    %v1471 = vsel %vm911, %v1470, %v1466
    %v1472 = vlaneseq
    %v1473 = vshrl.u32 %v1472, 7
    %v1474 = vsub.s32 %v913, %v1473
    %v1475 = vrot.slane %v653, %v1474
    %v1476 = vsel %vm918, %v1475, %v1471
    %v1477 = vlaneseq
    %v1478 = vshrl.u32 %v1477, 7
    %v1479 = vsub.s32 %v920, %v1478
    %v1480 = vrot.slane %v654, %v1479
    %v1481 = vsel %vm925, %v1480, %v1476
    %v1482 = vlaneseq
    %v1483 = vshrl.u32 %v1482, 7
    %v1484 = vsub.s32 %v927, %v1483
    %v1485 = vrot.slane %v655, %v1484
    %v1486 = vsel %vm932, %v1485, %v1481
    %vm1487 = vcmask 1041409
    %v1488 = vsel %vm1487, %v1091, %v933
    %vm1489 = vcmask 1042434
    %v1490 = vsel %vm1489, %v1249, %v1488
    %vm1491 = vcmask 1043459
    %v1492 = vsel %vm1491, %v1407, %v1490
    %v1493 = vsel %vm1487, %v1170, %v1012
    %v1494 = vsel %vm1489, %v1328, %v1493
    %v1495 = vsel %vm1491, %v1486, %v1494
    %1498 = vmatprep.subr.mxu0 0.0
    %1499 = vmatpush1.msra.mxu0 %v671
    %1500 = vmatprep.subr.mxu0 0.0
    %1501 = vmatpush1.msra.mxu0 %v670
    %1502 = vmatprep.subr.mxu0 0.0
    %1503 = vmatpush1.msra.mxu0 %v669
    %1504 = vmatprep.subr.mxu0 0.0
    %1505 = vmatpush1.msra.mxu0 %v668
    %1506 = vmatprep.subr.mxu0 0.0
    %1507 = vmatpush1.msra.mxu0 %v667
    %1508 = vmatprep.subr.mxu0 0.0
    %1509 = vmatpush1.msra.mxu0 %v666
    %1510 = vmatprep.subr.mxu0 0.0
    %1511 = vmatpush1.msra.mxu0 %v665
    %1512 = vmatprep.subr.mxu0 0.0
    %1513 = vmatpush1.msra.mxu0 %v664
    %1514 = vmatprep.subr.mxu0 0.0
    %1515 = vmatpush1.msra.mxu0 %v663
    %1516 = vmatprep.subr.mxu0 0.0
    %1517 = vmatpush1.msra.mxu0 %v662
    %1518 = vmatprep.subr.mxu0 0.0
    %1519 = vmatpush1.msra.mxu0 %v661
    %1520 = vmatprep.subr.mxu0 0.0
    %1521 = vmatpush1.msra.mxu0 %v660
    %1522 = vmatprep.subr.mxu0 0.0
    %1523 = vmatpush1.msra.mxu0 %v659
    %1524 = vmatprep.subr.mxu0 0.0
    %1525 = vmatpush1.msra.mxu0 %v658
    %1526 = vmatprep.subr.mxu0 0.0
    %1527 = vmatpush1.msra.mxu0 %v657
    %1528 = vmatprep.subr.mxu0 0.0
    %1529 = vmatpush1.msra.mxu0 %v656
    %1530 = vmatprep.subr.mxu0 0.0
    %1531 = vmatpush2.msra.mxu0 %v687
    %1532 = vmatprep.subr.mxu0 0.0
    %1533 = vmatpush2.msra.mxu0 %v686
    %1534 = vmatprep.subr.mxu0 0.0
    %1535 = vmatpush2.msra.mxu0 %v685
    %1536 = vmatprep.subr.mxu0 0.0
    %1537 = vmatpush2.msra.mxu0 %v684
    %1538 = vmatprep.subr.mxu0 0.0
    %1539 = vmatpush2.msra.mxu0 %v683
    %1540 = vmatprep.subr.mxu0 0.0
    %1541 = vmatpush2.msra.mxu0 %v682
    %1542 = vmatprep.subr.mxu0 0.0
    %1543 = vmatpush2.msra.mxu0 %v681
    %1544 = vmatprep.subr.mxu0 0.0
    %1545 = vmatpush2.msra.mxu0 %v680
    %1546 = vmatprep.subr.mxu0 0.0
    %1547 = vmatpush2.msra.mxu0 %v679
    %1548 = vmatprep.subr.mxu0 0.0
    %1549 = vmatpush2.msra.mxu0 %v678
    %1550 = vmatprep.subr.mxu0 0.0
    %1551 = vmatpush2.msra.mxu0 %v677
    %1552 = vmatprep.subr.mxu0 0.0
    %1553 = vmatpush2.msra.mxu0 %v676
    %1554 = vmatprep.subr.mxu0 0.0
    %1555 = vmatpush2.msra.mxu0 %v675
    %1556 = vmatprep.subr.mxu0 0.0
    %1557 = vmatpush2.msra.mxu0 %v674
    %1558 = vmatprep.subr.mxu0 0.0
    %1559 = vmatpush2.msra.mxu0 %v673
    %1560 = vmatprep.subr.mxu0 0.0
    %1561 = vmatpush2.msra.mxu0 %v672
    %1562 = vmatprep.mubr.f32.mxu0 %v1495
    %1563 = vmatmul.mubr.f32.gmra.mxu0 %v1492
    %v1564 = vpop.f32.mrf.mxu0
    %v1565 = vadd.f32 %v693, %v1564
    %v1566 = vpop.f32.mrf.mxu0
    %1567 = vdwg.mxu0
    %1568 = vst [vmem:[#allocation2] sm:$0xf] %v1565
    // Predicated region
    $region14: #{tpu_custom_call.1} parent=1 // pred_check
      _
    $region15: #{tpu_custom_call.1} parent=1 // pred_check_branch
      %1570 = sbr.rel (0) target = $region17
    $region16: #{tpu_custom_call.1} parent=1 // pred_region
      %s1572 = ssub.s32 64, 64
      %1573 = vsyncadd [#allocation3], %s1572
      %s1575 = sshll.u32 [#allocation2], 4
      %s1576 = int_to_ptr.vmem [resolvable:$true] %s1575
      %1578 = dma.vmem_to_hbm [thread:$0]  %s1576, 64, %s3, [#allocation3]
    $region17: #{tpu_custom_call.1} parent=1 // pred_fallthru
      _
    // Predicated region
    $region18: #{tpu_custom_call.1} parent=1 // pred_check
      _
    $region19: #{tpu_custom_call.1} parent=1 // pred_check_branch
      %1580 = sbr.rel (0) target = $region21
    $region20: #{tpu_custom_call.1} parent=1 // pred_region
      %1581 = dma.done [#allocation3], 64
    $region21: #{tpu_custom_call.1} parent=1 // pred_fallthru
      _
    %1582 = vsyncpa [#allocation3], 1

</llo_original>
